<compile_context>
chip_gen: v7x
topology: tpu7x:2x2x1
jax: 0.10.0
libtpu: 0.0.40
codegen_flags: <defaults>
</compile_context>

<pallas_src>
import jax
import jax.numpy as jnp
from jax import lax
from jax.experimental import pallas as pl
from jax.experimental.pallas import tpu as pltpu


def _round_up(x, m):
    return (x + m - 1) // m * m


def _default_tile_rows(n, dim, itemsize, target_bytes=2 * 1024 * 1024):
    """Pick a row tile: ~2 MiB per v buffer, multiple of 8, capped by N."""
    tn = max(8, (target_bytes // max(1, dim * itemsize)) // 8 * 8)
    tn = min(tn, _round_up(n, 8))
    return max(8, tn // 8 * 8)


def soft_attention(v, w1, w2, q, bias, *, tn=None):
    """Pallas forward of SoftAttention.

    v: (N, dim), w1/w2: (dim, dim), q: (1, dim),
    bias: (1,) = nn.Linear(dim, 1).bias.  Returns (dim,).
    """
    N, dim = v.shape
    itemsize = jnp.dtype(v.dtype).itemsize

    # ---- Hoisted one-shot GEMVs (plain JAX, off the Pallas hot path) -------
    w1f = w1.astype(jnp.float32)
    w2f = w2.astype(jnp.float32)
    qf = q.astype(jnp.float32)                       # (1, dim)
    vnf = v[-1].astype(jnp.float32)                  # (dim,)  (last row of v)
    bf = jnp.asarray(bias, jnp.float32).reshape(())

    u = jnp.dot(qf, w1f, preferred_element_type=jnp.float32)      # (1, dim)
    qw2 = jnp.dot(qf, w2f, preferred_element_type=jnp.float32)    # (1, dim)
    c = (jnp.sum(qw2 * vnf[None, :]) + bf * jnp.sum(qf)).reshape(1, 1)

    # ---- Tiling over the only O(N) operand ---------------------------------
    if tn is None:
        tn_eff = _default_tile_rows(N, dim, itemsize)
    else:
        tn_eff = max(8, min(tn, _round_up(N, 8)) // 8 * 8)
    grid = (pl.cdiv(N, tn_eff),)
    ragged = (N % tn_eff) != 0

    def kernel(v_ref, u_ref, c_ref, o_ref, acc_sc):
        k = pl.program_id(0)

        @pl.when(k == 0)
        def _():
            acc_sc[...] = jnp.zeros_like(acc_sc)

        v_blk = v_ref[...].astype(jnp.float32)                     # (TN, dim)
        if ragged:
            # Zero rows beyond N: the partial last block leaves stale VMEM in
            # those rows, which must never reach the accumulator.
            rows = lax.broadcasted_iota(jnp.int32, (tn_eff, 1), 0)
            nvalid = N - k * tn_eff
            v_blk = jnp.where(rows < nvalid, v_blk, 0.0)

        # Scores: VPU broadcast-mul + lane reduce; c is the row-constant term.
        e = jnp.sum(v_blk * u_ref[...], axis=-1, keepdims=True) + c_ref[...]
        # Weighted row-sum, accumulated per 8-row sublane group (VPU adds
        # only); the 8 -> 1 sublane reduce is deferred to the epilogue.
        ev = e * v_blk                                             # (TN, dim)
        acc_sc[...] += ev.reshape(tn_eff // 8, 8, dim).sum(axis=0)

        @pl.when(k == pl.num_programs(0) - 1)
        def _():
            o_ref[...] = jnp.sum(acc_sc[...], axis=0,
                                 keepdims=True).astype(o_ref.dtype)

    cost = pl.CostEstimate(
        flops=int(4 * N * dim),
        transcendentals=0,
        bytes_accessed=int(N * dim * itemsize + 2 * dim * 4 + 4
                           + dim * itemsize),
    )

    out = pl.pallas_call(
        kernel,
        out_shape=jax.ShapeDtypeStruct((1, dim), v.dtype),
        grid_spec=pltpu.PrefetchScalarGridSpec(
            num_scalar_prefetch=0,
            grid=grid,
            in_specs=[
                pl.BlockSpec((tn_eff, dim), lambda k: (k, 0)),   # v (streamed)
                pl.BlockSpec((1, dim), lambda k: (0, 0)),        # u = q @ W1
                pl.BlockSpec((1, 1), lambda k: (0, 0)),          # c (constant)
            ],
            out_specs=pl.BlockSpec((1, dim), lambda k: (0, 0)),
            scratch_shapes=[
                pltpu.VMEM((8, dim), jnp.float32),   # per-sublane-group acc
            ],
        ),
        compiler_params=pltpu.CompilerParams(
            dimension_semantics=("arbitrary",)),
        cost_estimate=cost,
    )(v, u, c)
    return out[0]  # (dim,)


def reference(v, w1, w2, q, bias):
    """Pure-JAX mirror of the PyTorch forward."""
    vn = v[-1]
    inp = v @ w1.T + (w2 @ vn)[None, :] + bias   # (N, dim); bias (1,) broadcasts
    att = inp @ q[0]                             # (N,)
    return att @ v                               # (dim,)


def init_params(key, dim):
    """Deterministic xavier_uniform_(gain=1.414) analogue + Linear bias init."""
    k1, k2, kq, kb = jax.random.split(key, 4)
    gain = 1.414

    def xavier(k, shape):
        fan_out, fan_in = shape[0], shape[1]
        bound = gain * (6.0 / (fan_in + fan_out)) ** 0.5
        return jax.random.uniform(k, shape, jnp.float32, -bound, bound)

    w1 = xavier(k1, (dim, dim))
    w2 = xavier(k2, (dim, dim))
    q = xavier(kq, (1, dim))
    bb = 1.0 / (dim ** 0.5)                      # nn.Linear(dim, 1) bias default
    bias = jax.random.uniform(kb, (1,), jnp.float32, -bb, bb)
    return w1, w2, q, bias
    # TODO(synk): self.output.weight of nn.Linear(dim, 1) is unused by the
    # PyTorch forward (only the bias participates), so it is not modeled.


if __name__ == "__main__":
    key = jax.random.PRNGKey(0)

    # Small primary test shape: N=8 rows, dim=32 (single aligned tile).
    N, dim = 8, 32
    kv, kp = jax.random.split(key)
    v = jax.random.normal(kv, (N, dim), jnp.float32)
    w1, w2, q, bias = init_params(kp, dim)

    out = jax.block_until_ready(soft_attention(v, w1, w2, q, bias))
    ref = reference(v, w1, w2, q, bias)
    assert out.shape == (dim,)
    assert jnp.allclose(out, ref, atol=1e-3, rtol=1e-3), (out, ref)

    # Secondary tests: ragged N (no padding pass) — once with the auto single
    # big tile, once multi-tile to exercise streaming + last-tile masking.
    N2, dim2 = 300, 128
    kv2, kp2 = jax.random.split(jax.random.PRNGKey(1))
    v2 = jax.random.normal(kv2, (N2, dim2), jnp.float32)
    w1b, w2b, qb, biasb = init_params(kp2, dim2)
    ref2 = reference(v2, w1b, w2b, qb, biasb)

    out2a = jax.block_until_ready(soft_attention(v2, w1b, w2b, qb, biasb))
    assert out2a.shape == (dim2,)
    assert jnp.allclose(out2a, ref2, atol=1e-2, rtol=1e-3), (out2a, ref2)

    out2b = jax.block_until_ready(
        soft_attention(v2, w1b, w2b, qb, biasb, tn=128))
    assert jnp.allclose(out2b, ref2, atol=1e-2, rtol=1e-3), (out2b, ref2)

    print("KERNEL_OK")
</pallas_src>

<mosaic_0001>
module attributes {stable_mosaic.version = 11 : i64} {
  func.func @kernel(%arg0: i32, %arg1: memref<8x32xf32, #tpu.memory_space<vmem>>, %arg2: memref<1x32xf32, #tpu.memory_space<vmem>>, %arg3: memref<1x1xf32, #tpu.memory_space<vmem>>, %arg4: memref<1x32xf32, #tpu.memory_space<vmem>>, %arg5: memref<8x32xf32, #tpu.memory_space<vmem>>) attributes {dimension_semantics = [#tpu.dimension_semantics<arbitrary>], iteration_bounds = array<i64: 1>, scalar_prefetch = 0 : i64, scratch_operands = 1 : i64, tpu.core_type = #tpu.core_type<tc>, window_params = [{transform_indices = @transform_0, window_bounds = array<i64: 8, 32>}, {pipeline_mode = #tpu.pipeline_mode<synchronous>, transform_indices = @transform_1, window_bounds = array<i64: 1, 32>}, {pipeline_mode = #tpu.pipeline_mode<synchronous>, transform_indices = @transform_2, window_bounds = array<i64: 1, 1>}, {pipeline_mode = #tpu.pipeline_mode<synchronous>, transform_indices = @transform_3, window_bounds = array<i64: 1, 32>}]} {
    %c0_i32 = arith.constant 0 : i32
    %0 = arith.cmpi eq, %arg0, %c0_i32 : i32
    %1 = arith.extui %0 : i1 to i32
    %c0_i32_0 = arith.constant 0 : i32
    %2 = arith.cmpi ne, %1, %c0_i32_0 : i32
    scf.if %2 {
      %cst_13 = arith.constant 0.000000e+00 : f32
      %22 = vector.broadcast %cst_13 : f32 to vector<8x32xf32>
      %c0_14 = arith.constant 0 : index
      %c0_15 = arith.constant 0 : index
      %23 = vector.load %arg5[%c0_14, %c0_15] : memref<8x32xf32, #tpu.memory_space<vmem>>, vector<8x32xf32>
      tpu.vector_store %arg5[%c0_14, %c0_15], %22 {strides = array<i32>} : memref<8x32xf32, #tpu.memory_space<vmem>>, vector<8x32xf32>,
    } else {
    }
    %c0 = arith.constant 0 : index
    %c0_1 = arith.constant 0 : index
    %3 = vector.load %arg1[%c0, %c0_1] : memref<8x32xf32, #tpu.memory_space<vmem>>, vector<8x32xf32>
    %c0_2 = arith.constant 0 : index
    %c0_3 = arith.constant 0 : index
    %4 = vector.load %arg2[%c0_2, %c0_3] : memref<1x32xf32, #tpu.memory_space<vmem>>, vector<1x32xf32>
    %5 = vector.broadcast %4 : vector<1x32xf32> to vector<8x32xf32>
    %6 = arith.mulf %3, %5 : vector<8x32xf32>
    %cst = arith.constant dense<0.000000e+00> : vector<8xf32>
    %7 = vector.multi_reduction <add>, %6, %cst [1] : vector<8x32xf32> to vector<8xf32>
    %8 = vector.shape_cast %7 : vector<8xf32> to vector<8x1xf32>
    %c0_4 = arith.constant 0 : index
    %c0_5 = arith.constant 0 : index
    %9 = vector.load %arg3[%c0_4, %c0_5] : memref<1x1xf32, #tpu.memory_space<vmem>>, vector<1x1xf32>
    %10 = vector.broadcast %9 : vector<1x1xf32> to vector<8x1xf32>
    %11 = arith.addf %8, %10 : vector<8x1xf32>
    %12 = vector.broadcast %11 : vector<8x1xf32> to vector<8x32xf32>
    %13 = arith.mulf %12, %3 : vector<8x32xf32>
    %c0_6 = arith.constant 0 : index
    %c0_7 = arith.constant 0 : index
    %14 = vector.load %arg5[%c0_6, %c0_7] : memref<8x32xf32, #tpu.memory_space<vmem>>, vector<8x32xf32>
    %15 = vector.shape_cast %13 : vector<8x32xf32> to vector<1x8x32xf32>
    %cst_8 = arith.constant dense<0.000000e+00> : vector<8x32xf32>
    %16 = vector.multi_reduction <add>, %15, %cst_8 [0] : vector<1x8x32xf32> to vector<8x32xf32>
    %17 = arith.addf %14, %16 : vector<8x32xf32>
    %c0_9 = arith.constant 0 : index
    %c0_10 = arith.constant 0 : index
    %18 = vector.load %arg5[%c0_9, %c0_10] : memref<8x32xf32, #tpu.memory_space<vmem>>, vector<8x32xf32>
    tpu.vector_store %arg5[%c0_9, %c0_10], %17 {strides = array<i32>} : memref<8x32xf32, #tpu.memory_space<vmem>>, vector<8x32xf32>,
    %c0_i32_11 = arith.constant 0 : i32
    %19 = arith.cmpi eq, %arg0, %c0_i32_11 : i32
    %20 = arith.extui %19 : i1 to i32
    %c0_i32_12 = arith.constant 0 : i32
    %21 = arith.cmpi ne, %20, %c0_i32_12 : i32
    scf.if %21 {
      %c0_13 = arith.constant 0 : index
      %c0_14 = arith.constant 0 : index
      %22 = vector.load %arg5[%c0_13, %c0_14] : memref<8x32xf32, #tpu.memory_space<vmem>>, vector<8x32xf32>
      %cst_15 = arith.constant dense<0.000000e+00> : vector<32xf32>
      %23 = vector.multi_reduction <add>, %22, %cst_15 [0] : vector<8x32xf32> to vector<32xf32>
      %24 = vector.shape_cast %23 : vector<32xf32> to vector<1x32xf32>
      %c0_16 = arith.constant 0 : index
      %c0_17 = arith.constant 0 : index
      %25 = vector.load %arg4[%c0_16, %c0_17] : memref<1x32xf32, #tpu.memory_space<vmem>>, vector<1x32xf32>
      tpu.vector_store %arg4[%c0_16, %c0_17], %24 {strides = array<i32>} : memref<1x32xf32, #tpu.memory_space<vmem>>, vector<1x32xf32>,
    } else {
    }
    return
  }
  func.func @transform_0(%arg0: i32) -> (i32, i32) {
    %c0_i32 = arith.constant 0 : i32
    %c0_i32_0 = arith.constant 0 : i32
    return %arg0, %c0_i32 : i32, i32
  }
  func.func @transform_1(%arg0: i32) -> (i32, i32) {
    %c0_i32 = arith.constant 0 : i32
    %c0_i32_0 = arith.constant 0 : i32
    %c0_i32_1 = arith.constant 0 : i32
    return %c0_i32, %c0_i32_0 : i32, i32
  }
  func.func @transform_2(%arg0: i32) -> (i32, i32) {
    %c0_i32 = arith.constant 0 : i32
    %c0_i32_0 = arith.constant 0 : i32
    %c0_i32_1 = arith.constant 0 : i32
    return %c0_i32, %c0_i32_0 : i32, i32
  }
  func.func @transform_3(%arg0: i32) -> (i32, i32) {
    %c0_i32 = arith.constant 0 : i32
    %c0_i32_0 = arith.constant 0 : i32
    %c0_i32_1 = arith.constant 0 : i32
    return %c0_i32, %c0_i32_0 : i32, i32
  }
}

</mosaic_0001>

<llo_original>
// kernel: tpu_custom_call.1
$region0: #{tpu_custom_call.1}
  #allocation0 [shape = 'u32[]', space=smem, size = 0x4, offset = 0x4, fixed_abs, tag = 'smem constant byte address 0x4 - core index']
  #allocation1 [shape = 'u32[144,128]{1,0:T(1,128)}', space=vmem, size = 0x12000, scoped, tag = 'internal scratch']
  #allocation2 [shape = 'f32[8,32]{1,0:T(8,128)}', space=vmem, size = 0x1000, scoped, tag = 'scratch operand']
  #allocation3 [shape = 'f32[1,1]{1,0:T(1,128)S(1)}', space=vmem, size = 0x200, scoped, tag = 'scoped memory for tpu_custom_call.1']
  %s0 = inlined_call_operand.hbm [shape: f32[8,32], index: 0, kind: input, shape index: {}]
  %s1 = inlined_call_operand.vmem [shape: f32[1,32], index: 1, kind: input, shape index: {}]
  %s2 = inlined_call_operand.<no memory space> [shape: f32[1,1], index: 2, kind: input, shape index: {}]
  %s3 = inlined_call_operand.hbm [shape: f32[1,32], index: 3, kind: output, shape index: {}]
  %s4 = sld [smem:[#allocation0]]
  $region34: #{tpu_custom_call.1} parent=0
    _
  %s6 = ssub.s32 1, %s4
  %s7 = scalar_select 0, %s6, %s4
  %v8 = vstv %s2
  %9 = vst [vmem:[#allocation3] sm:$0x1] %v8
  $region1: #{tpu_custom_call.1} parent=0
    #allocation4 [shape = 'u8[4096]{0}', space=vmem, size = 0x1000, scoped, tag = 'input window, operand 0, single buffered']
    #allocation5 [shape = 's32[1]{0}', space=sflag, size = 0x4, scoped, tag = 'scoped memory for tpu_custom_call.1']
    #allocation6 [shape = 's32[1]{0}', space=sflag, size = 0x4, scoped, tag = 'scoped memory for tpu_custom_call.1']
    #allocation7 [shape = 'u8[512]{0}', space=vmem, size = 0x400, scoped, tag = 'output window, operand 0, single buffered']
    %10 = vsyncpa [#allocation5], 0
    %11 = vsyncpa [#allocation6], 0
    // Predicated region
    $region2: #{tpu_custom_call.1} parent=1 // pred_check
      _
    $region3: #{tpu_custom_call.1} parent=1 // pred_check_branch
      %13 = sbr.rel (0) target = $region5
    $region4: #{tpu_custom_call.1} parent=1 // pred_region
      %s15 = ssub.s32 128, 128
      %16 = vsyncadd [#allocation5], %s15
      %s18 = sshll.u32 [#allocation4], 4
      %s19 = int_to_ptr.vmem [resolvable:$true] %s18
      %21 = dma.hbm_to_vmem [thread:$0]  %s0, 128, %s19, [#allocation5]
    $region5: #{tpu_custom_call.1} parent=1 // pred_fallthru
      _
    // Predicated region
    $region6: #{tpu_custom_call.1} parent=1 // pred_check
      _
    $region7: #{tpu_custom_call.1} parent=1 // pred_check_branch
      %23 = sbr.rel (0) target = $region9
    $region8: #{tpu_custom_call.1} parent=1 // pred_region
      _
    $region9: #{tpu_custom_call.1} parent=1 // pred_fallthru
      _
    // Predicated region
    $region10: #{tpu_custom_call.1} parent=1 // pred_check
      _
    $region11: #{tpu_custom_call.1} parent=1 // pred_check_branch
      %25 = sbr.rel (0) target = $region13
    $region12: #{tpu_custom_call.1} parent=1 // pred_region
      _
    $region13: #{tpu_custom_call.1} parent=1 // pred_fallthru
      _
    // Predicated region
    $region14: #{tpu_custom_call.1} parent=1 // pred_check
      _
    $region15: #{tpu_custom_call.1} parent=1 // pred_check_branch
      %27 = sbr.rel (0) target = $region17
    $region16: #{tpu_custom_call.1} parent=1 // pred_region
      %28 = dma.done [#allocation5], 128
    $region17: #{tpu_custom_call.1} parent=1 // pred_fallthru
      _
    %p29 = scmp.eq.s32.totalorder 0, 0
    // Predicated region
    $region18: #{tpu_custom_call.1} parent=1 // pred_check
      %p30 = pneg %p29
    $region19: #{tpu_custom_call.1} parent=1 // pred_check_branch
      %32 = sbr.rel (%p30) target = $region21
    $region20: #{tpu_custom_call.1} parent=1 // pred_region
      %vm33 = vcmask 261120
      %34 = vst.msk [vmem:[#allocation2] sm:$0xff] %vm33, 0.0
    $region21: #{tpu_custom_call.1} parent=1 // pred_fallthru
      _
    %v35 = vld [vmem:[#allocation4] sm:$0xff]
    %v36 = vld [vmem:[%s1] sm:$0x1]
    %v38 = vlaneseq
    %v39 = vshrl.u32 %v38, 7
    %v40 = vsub.s32 0, %v39
    %v41 = vrot.slane %v36, %v40
    %v43 = vmul.f32 %v35, %v41
    %vm44 = vcmask 261120
    %v45 = vsel %vm44, %v43, 0.0
    %46 = vadd.xlane.f32.xlu0 %v45
    %v47 = vpop.xlane.xlu0 %46
    %v48 = vld [vmem:[#allocation3] sm:$0x1]
    %v50 = vlaneseq
    %v51 = vshrl.u32 %v50, 7
    %v52 = vsub.s32 0, %v51
    %v53 = vrot.slane %v48, %v52
    %v55 = vadd.f32 %v47, %v53
    %57 = vset.pattern.permute.xlu0 0
    %58 = vperm.xlu0 %57, %v55
    %v59 = vpop.permute.xlu0 %58
    %v61 = vmul.f32 %v59, %v35
    %v62 = vld [vmem:[#allocation2] sm:$0xff]
    %v63 = vadd.f32 %v61, 0.0
    %v64 = vadd.f32 %v62, %v63
    %65 = vst.msk [vmem:[#allocation2] sm:$0xff] %vm44, %v64
    // Predicated region
    $region22: #{tpu_custom_call.1} parent=1 // pred_check
      %p66 = pneg %p29
    $region23: #{tpu_custom_call.1} parent=1 // pred_check_branch
      %68 = sbr.rel (%p66) target = $region25
    $region24: #{tpu_custom_call.1} parent=1 // pred_region
      %v69 = vld [vmem:[#allocation2] sm:$0xff]
      %v70 = vsel %vm44, %v69, 0.0
      %v71 = vrot.slane %v70, 4
      %v72 = vadd.f32 %v70, %v71
      %v73 = vrot.slane %v72, 2
      %v74 = vadd.f32 %v72, %v73
      %v75 = vrot.slane %v74, 1
      %v76 = vadd.f32 %v74, %v75
      %vm77 = vcmask 253952
      %78 = vst.msk [vmem:[#allocation7] sm:$0x1] %vm77, %v76
    $region25: #{tpu_custom_call.1} parent=1 // pred_fallthru
      _
    // Predicated region
    $region26: #{tpu_custom_call.1} parent=1 // pred_check
      _
    $region27: #{tpu_custom_call.1} parent=1 // pred_check_branch
      %80 = sbr.rel (0) target = $region29
    $region28: #{tpu_custom_call.1} parent=1 // pred_region
      %s82 = ssub.s32 16, 16
      %83 = vsyncadd [#allocation6], %s82
      %s85 = sshll.u32 [#allocation7], 4
      %s86 = int_to_ptr.vmem [resolvable:$true] %s85
      %88 = dma.vmem_to_hbm [thread:$0]  %s86, 16, %s3, [#allocation6]
    $region29: #{tpu_custom_call.1} parent=1 // pred_fallthru
      _
    // Predicated region
    $region30: #{tpu_custom_call.1} parent=1 // pred_check
      _
    $region31: #{tpu_custom_call.1} parent=1 // pred_check_branch
      %90 = sbr.rel (0) target = $region33
    $region32: #{tpu_custom_call.1} parent=1 // pred_region
      %91 = dma.done [#allocation6], 16
    $region33: #{tpu_custom_call.1} parent=1 // pred_fallthru
      _
    %92 = vsyncpa [#allocation5], 1
    %93 = vsyncpa [#allocation6], 1

</llo_original>
